<compile_context>
chip_gen: v5e
topology: v5e:2x2
jax: 0.10.0
libtpu: 0.0.40
codegen_flags: <defaults>
</compile_context>

<pallas_src>
import functools

import jax
import jax.numpy as jnp
from jax.experimental import pallas as pl
from jax.experimental.pallas import tpu as pltpu


def _round_up(x: int, m: int) -> int:
    return ((x + m - 1) // m) * m


def _cdiv(a: int, b: int) -> int:
    return (a + b - 1) // b


# Conservative VMEM planning: v7x has 64 MiB physical VMEM (v5e/v6e: 128 MiB).
# Requesting 40 MiB and planning against ~36 MiB keeps double buffering alive
# on every generation without silent regressions on v7x.
_VMEM_LIMIT_BYTES = 40 * 1024 * 1024
_VMEM_PLAN_BYTES = 36 * 1024 * 1024


def _mlp_head_kernel(x_ref, w1_ref, b1_ref, w2_ref, b2_ref, o_ref, acc_ref,
                     *, mxu_dtype):
    """Grid = (batch_tiles, k_tiles); input_dim (K) is the reduction axis."""
    k = pl.program_id(1)

    @pl.when(k == 0)
    def _():
        acc_ref[...] = jnp.zeros_like(acc_ref)

    # fc1 partial product: bf16 MXU operands, f32 accumulation on the MXU.
    acc_ref[...] += jnp.dot(
        x_ref[...].astype(mxu_dtype),
        w1_ref[...].astype(mxu_dtype),
        preferred_element_type=jnp.float32,
    )

    @pl.when(k == pl.num_programs(1) - 1)
    def _():
        # Bias + ReLU epilogue in f32 on the VPU.
        h = jnp.maximum(acc_ref[...] + b1_ref[...], 0.0)
        # fc2: bf16 MXU operands again, f32 accumulation, f32 bias add.
        y = jnp.dot(h.astype(mxu_dtype), w2_ref[...].astype(mxu_dtype),
                    preferred_element_type=jnp.float32)
        o_ref[...] = (y + b2_ref[...]).astype(o_ref.dtype)


def _vmem_bytes(tb, tk, h, c_pad, in_sz, out_sz):
    x_b = 2 * tb * tk * in_sz        # double-buffered activation tile
    w1_b = 2 * tk * h * in_sz        # weights are grid-invariant (constant block
    w2_b = 2 * h * c_pad * in_sz     # index for n_k==1) but budget 2 buffers
    o_b = 2 * tb * c_pad * out_sz    # double-buffered output tile
    acc_b = tb * h * 4               # f32 accumulator scratch
    misc = 4 * (h + c_pad) * in_sz + (1 << 20)
    return x_b + w1_b + w2_b + o_b + acc_b + misc


def _select_tiles(batch, d, h, c_pad, in_sz, out_sz, block_b, block_k):
    # Batch tile: large (amortize ~0.35us/grid-step overhead) but always kept
    # small enough that there are >= 2 grid steps when B allows, so the
    # "parallel" batch axis can be sharded across v7x's two TensorCores and
    # the x-load / y-store DMAs have something to overlap with.
    if batch <= 8:
        tb = 8
    else:
        tb = max(8, min(_round_up(block_b, 8), _round_up(_cdiv(batch, 2), 8)))

    tk = d
    # Shrink the batch tile first if VMEM is tight (v7x: 64 MiB physical).
    while tb > 64 and _vmem_bytes(tb, tk, h, c_pad, in_sz, out_sz) > _VMEM_PLAN_BYTES:
        tb = max(64, _round_up(tb // 2, 8))

    # K-tiling fallback for very large input_dim: keeps the kernel usable and
    # pipelined within the v7x VMEM budget.  Padded K regions would corrupt
    # the reduction, so tk must divide D exactly and be a multiple of 128.
    if _vmem_bytes(tb, tk, h, c_pad, in_sz, out_sz) > _VMEM_PLAN_BYTES and d % 128 == 0:
        best = None
        t = 128
        while t <= d:
            if d % t == 0 and _vmem_bytes(tb, t, h, c_pad, in_sz, out_sz) <= _VMEM_PLAN_BYTES:
                best = t
            t += 128
        if best is not None:
            tk = best

    # Explicit user override (must tile D evenly on 128-lane boundaries).
    if block_k is not None and block_k < d and d % block_k == 0 and block_k % 128 == 0:
        tk = block_k

    fits = _vmem_bytes(tb, tk, h, c_pad, in_sz, out_sz) <= _VMEM_PLAN_BYTES
    return tb, tk, fits


def _xla_mlp(x, w1, b1, w2, b2, return_padded):
    y = (jnp.dot(jnp.maximum(jnp.dot(x, w1) + b1, 0.0), w2) + b2).astype(x.dtype)
    if return_padded:
        c = y.shape[-1]
        c_pad = _round_up(c, 128)
        if c_pad != c:
            y = jnp.pad(y, ((0, 0), (0, c_pad - c)), constant_values=-1e30)
    return y


@functools.partial(
    jax.jit,
    static_argnames=("block_b", "block_k", "use_bf16_mxu", "return_padded",
                     "min_pallas_batch"))
def classification_head(x, w1, b1, w2, b2, *, block_b: int = 512,
                        block_k=None, use_bf16_mxu: bool = True,
                        return_padded: bool = False,
                        min_pallas_batch: int = 16):
    """y = relu(x @ w1 + b1) @ w2 + b2.

    x: (B, input_dim); w1: (input_dim, 128); b1: (128,);
    w2: (128, num_classes); b2: (num_classes,).
    Returns (B, num_classes).  With return_padded=True the lane-dense
    (B, round_up(num_classes, 128)) logits are returned with padded classes
    biased to -1e30 (safe for downstream softmax/argmax; avoids slice copy).
    """
    B, D = x.shape
    H = w1.shape[1]          # 128
    C = w2.shape[1]          # num_classes

    # Tiny batches: launch/epilogue overhead dominates -> plain XLA path.
    if B < min_pallas_batch:
        return _xla_mlp(x, w1, b1, w2, b2, return_padded)

    mxu_dtype = jnp.bfloat16 if use_bf16_mxu else x.dtype

    # Lane-dense output: pad only the tiny weight/bias class dim to 128 lanes
    # (unmasked vst).  Activations and the output batch dim are NOT padded.
    c_pad = _round_up(C, 128)
    if c_pad != C:
        w2p = jnp.pad(w2, ((0, 0), (0, c_pad - C)))
        fill = -1e30 if return_padded else 0.0
        b2p = jnp.pad(b2, ((0, c_pad - C),), constant_values=fill)
    else:
        w2p, b2p = w2, b2
    b1_2d = b1.reshape(1, H)
    b2_2d = b2p.reshape(1, c_pad)

    in_sz = jnp.dtype(x.dtype).itemsize
    out_sz = in_sz
    tb, tk, fits = _select_tiles(B, D, H, c_pad, in_sz, out_sz, block_b, block_k)
    if not fits:
        # Extreme shapes that do not fit even with K-tiling: let XLA handle it.
        return _xla_mlp(x, w1, b1, w2, b2, return_padded)

    n_b = _cdiv(B, tb)
    n_k = _cdiv(D, tk)   # exact: tk == D or tk divides D

    cost = pl.CostEstimate(
        flops=2 * B * (D * H + H * c_pad),
        transcendentals=0,
        bytes_accessed=(in_sz * (B * D + D * H + H + H * c_pad + c_pad)
                        + out_sz * B * c_pad),
    )

    kernel = functools.partial(_mlp_head_kernel, mxu_dtype=mxu_dtype)

    out = pl.pallas_call(
        kernel,
        out_shape=jax.ShapeDtypeStruct((B, c_pad), x.dtype),
        grid=(n_b, n_k),
        in_specs=[
            # Streaming activations: tiled over (batch, input_dim).
            pl.BlockSpec((tb, tk), lambda i, k: (i, k)),
            # Weights / biases: block index constant across the batch axis
            # (fully constant when n_k == 1) -> fetched once, VMEM-resident.
            # (pl.Buffered(1) could drop their spare pipeline buffer; the VMEM
            #  budget above already accounts for the default double buffer.)
            pl.BlockSpec((tk, H), lambda i, k: (k, 0)),
            pl.BlockSpec((1, H), lambda i, k: (0, 0)),
            pl.BlockSpec((H, c_pad), lambda i, k: (0, 0)),
            pl.BlockSpec((1, c_pad), lambda i, k: (0, 0)),
        ],
        out_specs=pl.BlockSpec((tb, c_pad), lambda i, k: (i, 0)),
        scratch_shapes=[pltpu.VMEM((tb, H), jnp.float32)],
        compiler_params=pltpu.CompilerParams(
            # Batch axis independent (shards across v7x TensorCores);
            # the input_dim reduction axis must stay "arbitrary".
            dimension_semantics=("parallel", "arbitrary"),
            vmem_limit_bytes=_VMEM_LIMIT_BYTES,
        ),
        cost_estimate=cost,
    )(x, w1, b1_2d, w2p, b2_2d)

    if return_padded or c_pad == C:
        return out
    # Lane-trim only (no batch slice); tiny compared with the main traffic.
    return out[:, :C]


if __name__ == "__main__":
    key = jax.random.PRNGKey(0)

    def make_params(k, input_dim, hidden, num_classes):
        kw1, kb1, kw2, kb2 = jax.random.split(k, 4)
        lim1 = 1.0 / (input_dim ** 0.5)
        lim2 = 1.0 / (hidden ** 0.5)
        w1 = jax.random.uniform(kw1, (input_dim, hidden), jnp.float32, -lim1, lim1)
        b1 = jax.random.uniform(kb1, (hidden,), jnp.float32, -lim1, lim1)
        w2 = jax.random.uniform(kw2, (hidden, num_classes), jnp.float32, -lim2, lim2)
        b2 = jax.random.uniform(kb2, (num_classes,), jnp.float32, -lim2, lim2)
        return w1, b1, w2, b2

    # --- Test 1: default path (bf16 MXU), partial last batch tile, n_k == 1.
    k1, k2, kx1, kx2 = jax.random.split(key, 4)
    B1, D1, H, C1 = 100, 32, 128, 10
    x1 = jax.random.normal(kx1, (B1, D1), dtype=jnp.float32)
    w1a, b1a, w2a, b2a = make_params(k1, D1, H, C1)
    out1 = jax.block_until_ready(classification_head(x1, w1a, b1a, w2a, b2a))
    ref1 = jnp.maximum(x1 @ w1a + b1a, 0.0) @ w2a + b2a
    assert out1.shape == (B1, C1)
    assert jnp.allclose(out1, ref1, atol=2e-2, rtol=2e-2), "bf16 path mismatch"

    # --- Test 2: forced K-tiling path (f32 MXU operands), tight tolerance.
    B2, D2, C2 = 64, 256, 10
    x2 = jax.random.normal(kx2, (B2, D2), dtype=jnp.float32)
    w1b, b1b, w2b, b2b = make_params(k2, D2, H, C2)
    out2 = jax.block_until_ready(
        classification_head(x2, w1b, b1b, w2b, b2b,
                            block_k=128, use_bf16_mxu=False))
    ref2 = jnp.maximum(x2 @ w1b + b1b, 0.0) @ w2b + b2b
    assert out2.shape == (B2, C2)
    assert jnp.allclose(out2, ref2, atol=1e-3, rtol=1e-3), "K-tiled path mismatch"

    print("KERNEL_OK")
</pallas_src>

<mosaic_0001>
module attributes {stable_mosaic.version = 11 : i64} {
  func.func @_mlp_head_kernel(%arg0: i32, %arg1: i32, %arg2: memref<56x32xf32, #tpu.memory_space<vmem>>, %arg3: memref<32x128xf32, #tpu.memory_space<vmem>>, %arg4: memref<1x128xf32, #tpu.memory_space<vmem>>, %arg5: memref<128x128xf32, #tpu.memory_space<vmem>>, %arg6: memref<1x128xf32, #tpu.memory_space<vmem>>, %arg7: memref<56x128xf32, #tpu.memory_space<vmem>>, %arg8: memref<56x128xf32, #tpu.memory_space<vmem>>) attributes {dimension_semantics = [#tpu.dimension_semantics<parallel>, #tpu.dimension_semantics<arbitrary>], iteration_bounds = array<i64: 2, 1>, scalar_prefetch = 0 : i64, scratch_operands = 1 : i64, tpu.core_type = #tpu.core_type<tc>, window_params = [{transform_indices = @transform_0, window_bounds = array<i64: 56, 32>}, {transform_indices = @transform_1, window_bounds = array<i64: 32, 128>}, {pipeline_mode = #tpu.pipeline_mode<synchronous>, transform_indices = @transform_2, window_bounds = array<i64: 1, 128>}, {pipeline_mode = #tpu.pipeline_mode<synchronous>, transform_indices = @transform_3, window_bounds = array<i64: 128, 128>}, {pipeline_mode = #tpu.pipeline_mode<synchronous>, transform_indices = @transform_4, window_bounds = array<i64: 1, 128>}, {transform_indices = @transform_5, window_bounds = array<i64: 56, 128>}]} {
    %c0_i32 = arith.constant 0 : i32
    %0 = arith.cmpi eq, %arg1, %c0_i32 : i32
    %1 = arith.extui %0 : i1 to i32
    %c0_i32_0 = arith.constant 0 : i32
    %2 = arith.cmpi ne, %1, %c0_i32_0 : i32
    scf.if %2 {
      %cst_10 = arith.constant 0.000000e+00 : f32
      %14 = vector.broadcast %cst_10 : f32 to vector<56x128xf32>
      %c0_11 = arith.constant 0 : index
      %c0_12 = arith.constant 0 : index
      %15 = vector.load %arg8[%c0_11, %c0_12] : memref<56x128xf32, #tpu.memory_space<vmem>>, vector<56x128xf32>
      tpu.vector_store %arg8[%c0_11, %c0_12], %14 {strides = array<i32>} : memref<56x128xf32, #tpu.memory_space<vmem>>, vector<56x128xf32>,
    } else {
    }
    %c0 = arith.constant 0 : index
    %c0_1 = arith.constant 0 : index
    %3 = vector.load %arg8[%c0, %c0_1] : memref<56x128xf32, #tpu.memory_space<vmem>>, vector<56x128xf32>
    %c0_2 = arith.constant 0 : index
    %c0_3 = arith.constant 0 : index
    %4 = vector.load %arg2[%c0_2, %c0_3] : memref<56x32xf32, #tpu.memory_space<vmem>>, vector<56x32xf32>
    %5 = arith.truncf %4 : vector<56x32xf32> to vector<56x32xbf16>
    %c0_4 = arith.constant 0 : index
    %c0_5 = arith.constant 0 : index
    %6 = vector.load %arg3[%c0_4, %c0_5] : memref<32x128xf32, #tpu.memory_space<vmem>>, vector<32x128xf32>
    %7 = arith.truncf %6 : vector<32x128xf32> to vector<32x128xbf16>
    %cst = arith.constant dense<0.000000e+00> : vector<56x128xf32>
    %8 = tpu.matmul %5, %7, %cst {dimension_numbers = #tpu.dot_dimension_numbers<[1], [0], [0], [1], [0, 0, 1, 1], [], []>} : vector<56x32xbf16>, vector<32x128xbf16>, vector<56x128xf32> -> vector<56x128xf32>
    %9 = arith.addf %3, %8 : vector<56x128xf32>
    %c0_6 = arith.constant 0 : index
    %c0_7 = arith.constant 0 : index
    %10 = vector.load %arg8[%c0_6, %c0_7] : memref<56x128xf32, #tpu.memory_space<vmem>>, vector<56x128xf32>
    tpu.vector_store %arg8[%c0_6, %c0_7], %9 {strides = array<i32>} : memref<56x128xf32, #tpu.memory_space<vmem>>, vector<56x128xf32>,
    %c0_i32_8 = arith.constant 0 : i32
    %11 = arith.cmpi eq, %arg1, %c0_i32_8 : i32
    %12 = arith.extui %11 : i1 to i32
    %c0_i32_9 = arith.constant 0 : i32
    %13 = arith.cmpi ne, %12, %c0_i32_9 : i32
    scf.if %13 {
      %c0_10 = arith.constant 0 : index
      %c0_11 = arith.constant 0 : index
      %14 = vector.load %arg8[%c0_10, %c0_11] : memref<56x128xf32, #tpu.memory_space<vmem>>, vector<56x128xf32>
      %c0_12 = arith.constant 0 : index
      %c0_13 = arith.constant 0 : index
      %15 = vector.load %arg4[%c0_12, %c0_13] : memref<1x128xf32, #tpu.memory_space<vmem>>, vector<1x128xf32>
      %16 = vector.broadcast %15 : vector<1x128xf32> to vector<56x128xf32>
      %17 = arith.addf %14, %16 : vector<56x128xf32>
      %cst_14 = arith.constant 0.000000e+00 : f32
      %18 = vector.broadcast %cst_14 : f32 to vector<56x128xf32>
      %19 = arith.maximumf %17, %18 : vector<56x128xf32>
      %20 = arith.truncf %19 : vector<56x128xf32> to vector<56x128xbf16>
      %c0_15 = arith.constant 0 : index
      %c0_16 = arith.constant 0 : index
      %21 = vector.load %arg5[%c0_15, %c0_16] : memref<128x128xf32, #tpu.memory_space<vmem>>, vector<128x128xf32>
      %22 = arith.truncf %21 : vector<128x128xf32> to vector<128x128xbf16>
      %cst_17 = arith.constant dense<0.000000e+00> : vector<56x128xf32>
      %23 = tpu.matmul %20, %22, %cst_17 {dimension_numbers = #tpu.dot_dimension_numbers<[1], [0], [0], [1], [0, 0, 1, 1], [], []>} : vector<56x128xbf16>, vector<128x128xbf16>, vector<56x128xf32> -> vector<56x128xf32>
      %c0_18 = arith.constant 0 : index
      %c0_19 = arith.constant 0 : index
      %24 = vector.load %arg6[%c0_18, %c0_19] : memref<1x128xf32, #tpu.memory_space<vmem>>, vector<1x128xf32>
      %25 = vector.broadcast %24 : vector<1x128xf32> to vector<56x128xf32>
      %26 = arith.addf %23, %25 : vector<56x128xf32>
      %c0_20 = arith.constant 0 : index
      %c0_21 = arith.constant 0 : index
      %27 = vector.load %arg7[%c0_20, %c0_21] : memref<56x128xf32, #tpu.memory_space<vmem>>, vector<56x128xf32>
      tpu.vector_store %arg7[%c0_20, %c0_21], %26 {strides = array<i32>} : memref<56x128xf32, #tpu.memory_space<vmem>>, vector<56x128xf32>,
    } else {
    }
    return
  }
  func.func @transform_0(%arg0: i32, %arg1: i32) -> (i32, i32) {
    %c0_i32 = arith.constant 0 : i32
    return %arg0, %arg1 : i32, i32
  }
  func.func @transform_1(%arg0: i32, %arg1: i32) -> (i32, i32) {
    %c0_i32 = arith.constant 0 : i32
    %c0_i32_0 = arith.constant 0 : i32
    return %arg1, %c0_i32 : i32, i32
  }
  func.func @transform_2(%arg0: i32, %arg1: i32) -> (i32, i32) {
    %c0_i32 = arith.constant 0 : i32
    %c0_i32_0 = arith.constant 0 : i32
    %c0_i32_1 = arith.constant 0 : i32
    return %c0_i32, %c0_i32_0 : i32, i32
  }
  func.func @transform_3(%arg0: i32, %arg1: i32) -> (i32, i32) {
    %c0_i32 = arith.constant 0 : i32
    %c0_i32_0 = arith.constant 0 : i32
    %c0_i32_1 = arith.constant 0 : i32
    return %c0_i32, %c0_i32_0 : i32, i32
  }
  func.func @transform_4(%arg0: i32, %arg1: i32) -> (i32, i32) {
    %c0_i32 = arith.constant 0 : i32
    %c0_i32_0 = arith.constant 0 : i32
    %c0_i32_1 = arith.constant 0 : i32
    return %c0_i32, %c0_i32_0 : i32, i32
  }
  func.func @transform_5(%arg0: i32, %arg1: i32) -> (i32, i32) {
    %c0_i32 = arith.constant 0 : i32
    %c0_i32_0 = arith.constant 0 : i32
    return %arg0, %c0_i32 : i32, i32
  }
}

</mosaic_0001>

<llo_original>
// kernel: classification_head.1
$region0: #{classification_head.1}
  #allocation0 [shape = 'u32[]', space=smem, size = 0x4, offset = 0x4, fixed_abs, tag = 'smem constant byte address 0x4 - core index']
  #allocation1 [shape = 'u32[72,128]{1,0:T(1,128)}', space=vmem, size = 0x9000, scoped, tag = 'internal scratch']
  #allocation2 [shape = 'f32[56,128]{1,0:T(8,128)}', space=vmem, size = 0x7000, scoped, tag = 'scratch operand']
  %s0 = inlined_call_operand.vmem [shape: f32[100,32], index: 0, kind: input, shape index: {}]
  %s1 = inlined_call_operand.vmem [shape: f32[32,128], index: 1, kind: input, shape index: {}]
  %s2 = inlined_call_operand.vmem [shape: f32[1,128], index: 2, kind: input, shape index: {}]
  %s3 = inlined_call_operand.vmem [shape: f32[128,128], index: 3, kind: input, shape index: {}]
  %s4 = inlined_call_operand.vmem [shape: f32[1,128], index: 4, kind: input, shape index: {}]
  %s5 = inlined_call_operand.vmem [shape: f32[100,128], index: 5, kind: output, shape index: {}]
  %s6 = sld [smem:[#allocation0]]
  $region109: #{classification_head.1} parent=0
    _
  %s8 = ssub.s32 1, %s6
  %s9 = scalar_select 0, %s8, %s6
  $region1: #{classification_head.1} parent=0
    #allocation3 [shape = 'u8[57344]{0}', space=vmem, size = 0xe000, scoped, tag = 'output window, operand 0']
    loop: start=0, step=1, limit=4
    $region2: #{classification_head.1} parent=1 // loop_pre_header
      _
    $region3: #{classification_head.1} parent=1 // loop_header
      %s11 = sphi 0, %s15
      %p12 = scmp.ge.s32.totalorder %s11, 4
      %s18 = sphi 0, %s30
      %s19 = sphi 0, %s26
      %s20 = sphi 0, %s18
      %s21 = sphi 0, %s19
      %s22 = sphi 0, %s20
      %s23 = sphi 0, %s21
      %s35 = sphi 0, %s37
      %s38 = sphi 0, %s35
      %s39 = sphi 0, %s38
      %s55 = sphi 0, %s39
      %s61 = sphi 0, %s63
      %s64 = sphi 0, %s61
      %s65 = sphi 0, %s64
      %s81 = sphi 0, %s65
      %s85 = sphi 0, %s85
      %s87 = sphi 0, %s85
      %s88 = sphi 0, %s87
      %s102 = sphi 0, %s88
      %s106 = sphi 0, %s106
      %s108 = sphi 0, %s106
      %s109 = sphi 0, %s108
      %s123 = sphi 0, %s109
      %s127 = sphi 0, %s127
      %s129 = sphi 0, %s127
      %s130 = sphi 0, %s129
      %s144 = sphi 0, %s130
      %s150 = sphi 0, %s152
      %s153 = sphi 0, %s150
      %s154 = sphi 0, %s153
      %s170 = sphi 0, %s154
    $region4: #{classification_head.1} parent=1 // loop_header_branch
      %14 = sbr.rel (%p12) target = $region8
    $region5: #{classification_head.1} parent=1 // loop_body
      %s16 = ssub.s32 %s11, 1
      %s17 = ssub.s32 %s11, 2
      %s24 = sadd.s32 1, %s19
      %p25 = scmp.ge.s32.totalorder %s24, 1
      %s26 = scalar_select %p25, 0, %s24
      %s27 = sadd.s32 1, %s18
      %s28 = scalar_select %p25, %s27, %s18
      %p29 = scmp.ge.s32.totalorder %s28, 2
      %s30 = scalar_select %p29, 0, %s28
      %s31 = ssub.s32 %s18, %s30
      %s32 = ssub.s32 %s19, %s26
      %s33 = sor.u32 %s31, %s32
      %p34 = scmp.eq.s32.totalorder %s33, 0
      %s36 = sadd.s32 %s35, 1
      %s37 = scalar_select %p34, %s35, %s36
      %p40 = pneg %p34
      %p41 = scmp.eq.s32.totalorder %s11, 1
      %p42 = por %p40, %p41
      %p43 = scmp.ne.s32.totalorder %s35, %s38
      %p44 = scmp.eq.s32.totalorder %s11, 0
      %p45 = por %p43, %p44
      %p46 = scmp.ne.s32.totalorder %s35, %s38
      %p47 = scmp.eq.s32.totalorder %s16, 1
      %p48 = por %p46, %p47
      %p49 = scmp.ne.s32.totalorder %s38, %s39
      %p50 = scmp.eq.s32.totalorder %s16, 0
      %p51 = por %p49, %p50
      %p52 = scmp.ne.s32.totalorder %s38, %s39
      %p53 = scmp.eq.s32.totalorder %s17, 1
      %p54 = por %p52, %p53
      %p56 = scmp.ne.s32.totalorder %s39, %s55
      %p57 = scmp.eq.s32.totalorder %s17, 0
      %p58 = por %p56, %p57
      %s59 = ssub.s32 %s19, %s26
      %p60 = scmp.eq.s32.totalorder %s59, 0
      %s62 = sadd.s32 %s61, 1
      %s63 = scalar_select %p60, %s61, %s62
      %p66 = pneg %p60
      %p67 = scmp.eq.s32.totalorder %s11, 1
      %p68 = por %p66, %p67
      %p69 = scmp.ne.s32.totalorder %s61, %s64
      %p70 = scmp.eq.s32.totalorder %s11, 0
      %p71 = por %p69, %p70
      %p72 = scmp.ne.s32.totalorder %s61, %s64
      %p73 = scmp.eq.s32.totalorder %s16, 1
      %p74 = por %p72, %p73
      %p75 = scmp.ne.s32.totalorder %s64, %s65
      %p76 = scmp.eq.s32.totalorder %s16, 0
      %p77 = por %p75, %p76
      %p78 = scmp.ne.s32.totalorder %s64, %s65
      %p79 = scmp.eq.s32.totalorder %s17, 1
      %p80 = por %p78, %p79
      %p82 = scmp.ne.s32.totalorder %s65, %s81
      %p83 = scmp.eq.s32.totalorder %s17, 0
      %p84 = por %p82, %p83
      %s86 = sadd.s32 %s85, 1
      %p89 = scmp.eq.s32.totalorder %s11, 1
      %p90 = scmp.ne.s32.totalorder %s85, %s87
      %p91 = scmp.eq.s32.totalorder %s11, 0
      %p92 = por %p90, %p91
      %p93 = scmp.ne.s32.totalorder %s85, %s87
      %p94 = scmp.eq.s32.totalorder %s16, 1
      %p95 = por %p93, %p94
      %p96 = scmp.ne.s32.totalorder %s87, %s88
      %p97 = scmp.eq.s32.totalorder %s16, 0
      %p98 = por %p96, %p97
      %p99 = scmp.ne.s32.totalorder %s87, %s88
      %p100 = scmp.eq.s32.totalorder %s17, 1
      %p101 = por %p99, %p100
      %p103 = scmp.ne.s32.totalorder %s88, %s102
      %p104 = scmp.eq.s32.totalorder %s17, 0
      %p105 = por %p103, %p104
      %s107 = sadd.s32 %s106, 1
      %p110 = scmp.eq.s32.totalorder %s11, 1
      %p111 = scmp.ne.s32.totalorder %s106, %s108
      %p112 = scmp.eq.s32.totalorder %s11, 0
      %p113 = por %p111, %p112
      %p114 = scmp.ne.s32.totalorder %s106, %s108
      %p115 = scmp.eq.s32.totalorder %s16, 1
      %p116 = por %p114, %p115
      %p117 = scmp.ne.s32.totalorder %s108, %s109
      %p118 = scmp.eq.s32.totalorder %s16, 0
      %p119 = por %p117, %p118
      %p120 = scmp.ne.s32.totalorder %s108, %s109
      %p121 = scmp.eq.s32.totalorder %s17, 1
      %p122 = por %p120, %p121
      %p124 = scmp.ne.s32.totalorder %s109, %s123
      %p125 = scmp.eq.s32.totalorder %s17, 0
      %p126 = por %p124, %p125
      %s128 = sadd.s32 %s127, 1
      %p131 = scmp.eq.s32.totalorder %s11, 1
      %p132 = scmp.ne.s32.totalorder %s127, %s129
      %p133 = scmp.eq.s32.totalorder %s11, 0
      %p134 = por %p132, %p133
      %p135 = scmp.ne.s32.totalorder %s127, %s129
      %p136 = scmp.eq.s32.totalorder %s16, 1
      %p137 = por %p135, %p136
      %p138 = scmp.ne.s32.totalorder %s129, %s130
      %p139 = scmp.eq.s32.totalorder %s16, 0
      %p140 = por %p138, %p139
      %p141 = scmp.ne.s32.totalorder %s129, %s130
      %p142 = scmp.eq.s32.totalorder %s17, 1
      %p143 = por %p141, %p142
      %p145 = scmp.ne.s32.totalorder %s130, %s144
      %p146 = scmp.eq.s32.totalorder %s17, 0
      %p147 = por %p145, %p146
      %s148 = ssub.s32 %s18, %s30
      %p149 = scmp.eq.s32.totalorder %s148, 0
      %s151 = sadd.s32 %s150, 1
      %s152 = scalar_select %p149, %s150, %s151
      %p155 = pneg %p149
      %p156 = scmp.eq.s32.totalorder %s11, 1
      %p157 = por %p155, %p156
      %p158 = scmp.ne.s32.totalorder %s150, %s153
      %p159 = scmp.eq.s32.totalorder %s11, 0
      %p160 = por %p158, %p159
      %p161 = scmp.ne.s32.totalorder %s150, %s153
      %p162 = scmp.eq.s32.totalorder %s16, 1
      %p163 = por %p161, %p162
      %p164 = scmp.ne.s32.totalorder %s153, %s154
      %p165 = scmp.eq.s32.totalorder %s16, 0
      %p166 = por %p164, %p165
      %p167 = scmp.ne.s32.totalorder %s153, %s154
      %p168 = scmp.eq.s32.totalorder %s17, 1
      %p169 = por %p167, %p168
      %p171 = scmp.ne.s32.totalorder %s154, %s170
      %p172 = scmp.eq.s32.totalorder %s17, 0
      %p173 = por %p171, %p172
      %p174 = scmp.le.s32.totalorder 1, %s11
      %p175 = scmp.lt.s32.totalorder %s11, 3
      %p176 = pnand %p174, %p175
      %p177 = pneg %p176
      // Predicated region
      $region9: #{classification_head.1} parent=5 // pred_check
        _
      $region10: #{classification_head.1} parent=5 // pred_check_branch
        %179 = sbr.rel (%p176) target = $region12
      $region11: #{classification_head.1} parent=5 // pred_region
        %s180 = ssub.s32 %s11, 1
        // Predicated region
        $region13: #{classification_head.1} parent=11 // pred_check
          %p181 = pneg %p77
        $region14: #{classification_head.1} parent=11 // pred_check_branch
          %183 = sbr.rel (%p181) target = $region16
        $region15: #{classification_head.1} parent=11 // pred_region
          %s184 = smul.u32 4, %s21
          %p185 = scmp.lt.s32.totalorder %s184, 3
          %s186 = scalar_select %p185, %s184, 3
          %s187 = smul.addr %s186, 8
          %s188 = scalar_lea.vmem %s1, %s187
          %s189 = smul.u32 4, %s21
        $region16: #{classification_head.1} parent=11 // pred_fallthru
          _
        // Predicated region
        $region17: #{classification_head.1} parent=11 // pred_check
          %p190 = pneg %p98
        $region18: #{classification_head.1} parent=11 // pred_check_branch
          %192 = sbr.rel (%p190) target = $region20
        $region19: #{classification_head.1} parent=11 // pred_region
          _
        $region20: #{classification_head.1} parent=11 // pred_fallthru
          _
        // Predicated region
        $region21: #{classification_head.1} parent=11 // pred_check
          %p193 = pneg %p119
        $region22: #{classification_head.1} parent=11 // pred_check_branch
          %195 = sbr.rel (%p193) target = $region24
        $region23: #{classification_head.1} parent=11 // pred_region
          _
        $region24: #{classification_head.1} parent=11 // pred_fallthru
          _
        // Predicated region
        $region25: #{classification_head.1} parent=11 // pred_check
          %p196 = pneg %p140
        $region26: #{classification_head.1} parent=11 // pred_check_branch
          %198 = sbr.rel (%p196) target = $region28
        $region27: #{classification_head.1} parent=11 // pred_region
          _
        $region28: #{classification_head.1} parent=11 // pred_fallthru
          _
      $region12: #{classification_head.1} parent=5 // pred_fallthru
        _
      %p199 = scmp.lt.s32.totalorder %s11, 2
      // Predicated region
      $region29: #{classification_head.1} parent=5 // pred_check
        %p200 = pneg %p199
      $region30: #{classification_head.1} parent=5 // pred_check_branch
        %202 = sbr.rel (%p200) target = $region32
      $region31: #{classification_head.1} parent=5 // pred_region
        // Predicated region
        $region33: #{classification_head.1} parent=31 // pred_check
          %p203 = pneg %p45
        $region34: #{classification_head.1} parent=31 // pred_check_branch
          %205 = sbr.rel (%p203) target = $region36
        $region35: #{classification_head.1} parent=31 // pred_region
          %s206 = smul.u32 7, %s18
          %s207 = ssub.s32 13, %s206
          %p208 = scmp.lt.s32.totalorder %s207, 7
          %s209 = scalar_select %p208, %s207, 7
          %s210 = smul.u32 8, %s209
          %p211 = scmp.lt.s32.totalorder %s206, 12
          %s212 = scalar_select %p211, %s206, 12
          %p213 = scmp.lt.s32.totalorder %s19, 0
          %s214 = scalar_select %p213, %s19, 0
          %s215 = sadd.s32 %s214, %s212
          %s216 = smul.addr %s215, 8
          %s217 = scalar_lea.vmem %s0, %s216
          %s218 = smul.u32 7, %s18
          %s219 = ssub.s32 13, %s218
          %p220 = scmp.lt.s32.totalorder %s219, 7
          %s221 = scalar_select %p220, %s219, 7
          %s222 = smul.u32 8, %s221
        $region36: #{classification_head.1} parent=31 // pred_fallthru
          _
      $region32: #{classification_head.1} parent=5 // pred_fallthru
        _
      %p223 = scmp.le.s32.totalorder 1, %s11
      %p224 = scmp.lt.s32.totalorder %s11, 3
      %p225 = pnand %p223, %p224
      %p226 = pneg %p225
      // Predicated region
      $region37: #{classification_head.1} parent=5 // pred_check
        _
      $region38: #{classification_head.1} parent=5 // pred_check_branch
        %228 = sbr.rel (%p225) target = $region40
      $region39: #{classification_head.1} parent=5 // pred_region
        %s229 = ssub.s32 %s11, 1
        %s230 = smul.u32 7, %s20
        %s231 = ssub.s32 13, %s230
        %p232 = scmp.lt.s32.totalorder %s231, 7
        %s233 = scalar_select %p232, %s231, 7
        %s234 = smul.u32 8, %s233
        %p235 = scmp.lt.s32.totalorder %s230, 12
        %s236 = scalar_select %p235, %s230, 12
        %p237 = scmp.lt.s32.totalorder %s21, 0
        %s238 = scalar_select %p237, %s21, 0
        %s239 = sadd.s32 %s238, %s236
        %s240 = smul.addr %s239, 8
        %s241 = scalar_lea.vmem %s0, %s240
        %p242 = pneg %p51
        %p243 = pneg %p48
        %s244 = smul.u32 4, %s21
        %p245 = scmp.lt.s32.totalorder %s244, 3
        %s246 = scalar_select %p245, %s244, 3
        %s247 = smul.addr %s246, 8
        %s248 = scalar_lea.vmem %s1, %s247
        %p249 = pneg %p77
        %p250 = pneg %p74
        %p251 = pneg %p98
        %p252 = pneg %p95
        %p253 = pneg %p119
        %p254 = pneg %p116
        %p255 = pneg %p140
        %p256 = pneg %p137
        %p257 = pneg %p166
        %p258 = pneg %p163
        %s259 = sand.u32 %s153, 1
        %s260 = sand.u32 %s153, 1
        %s261 = smul.addr %s260, 56
        %s262 = scalar_lea.vmem [#allocation3], %s261
        %s263 = smul.u32 7, %s20
        %s264 = ssub.s32 13, %s263
        %p265 = scmp.lt.s32.totalorder %s264, 7
        %s266 = scalar_select %p265, %s264, 7
        %s267 = smul.u32 8, %s266
        %p268 = scmp.lt.s32.totalorder %s263, 12
        %s269 = scalar_select %p268, %s263, 12
        %p270 = scmp.lt.s32.totalorder %s21, 0
        %s271 = scalar_select %p270, %s21, 0
        %s272 = sadd.s32 %s271, %s269
        %s273 = smul.addr %s272, 8
        %s274 = scalar_lea.vmem %s0, %s273
        %s275 = smul.u32 7, %s20
        %s276 = ssub.s32 13, %s275
        %p277 = scmp.lt.s32.totalorder %s276, 7
        %s278 = scalar_select %p277, %s276, 7
        %s279 = smul.u32 8, %s278
        %s280 = smul.u32 4, %s21
        %p281 = scmp.lt.s32.totalorder %s280, 3
        %s282 = scalar_select %p281, %s280, 3
        %s283 = smul.addr %s282, 8
        %s284 = scalar_lea.vmem %s1, %s283
        %s285 = smul.u32 4, %s21
        %s286 = smul.u32 7, %s20
        %s287 = ssub.s32 13, %s286
        %p288 = scmp.lt.s32.totalorder %s287, 7
        %s289 = scalar_select %p288, %s287, 7
        %s290 = smul.u32 8, %s289
        %p292 = scmp.eq.s32.totalorder %s21, 0
        // Predicated region
        $region41: #{classification_head.1} parent=39 // pred_check
          %p293 = pneg %p292
        $region42: #{classification_head.1} parent=39 // pred_check_branch
          %295 = sbr.rel (%p293) target = $region44
        $region43: #{classification_head.1} parent=39 // pred_region
          %296 = vst [vmem:[#allocation2] sm:$0xff] 0.0
          %297 = vst [vmem:[#allocation2 + $0x8] sm:$0xff] 0.0
          %298 = vst [vmem:[#allocation2 + $0x10] sm:$0xff] 0.0
          %299 = vst [vmem:[#allocation2 + $0x18] sm:$0xff] 0.0
          %300 = vst [vmem:[#allocation2 + $0x20] sm:$0xff] 0.0
          %301 = vst [vmem:[#allocation2 + $0x28] sm:$0xff] 0.0
          %302 = vst [vmem:[#allocation2 + $0x30] sm:$0xff] 0.0
        $region44: #{classification_head.1} parent=39 // pred_fallthru
          _
        %v303 = vld [vmem:[#allocation2] sm:$0xff]
        %v304 = vld [vmem:[#allocation2 + $0x8] sm:$0xff]
        %v305 = vld [vmem:[#allocation2 + $0x10] sm:$0xff]
        %v306 = vld [vmem:[#allocation2 + $0x18] sm:$0xff]
        %v307 = vld [vmem:[#allocation2 + $0x20] sm:$0xff]
        %v308 = vld [vmem:[#allocation2 + $0x28] sm:$0xff]
        %v309 = vld [vmem:[#allocation2 + $0x30] sm:$0xff]
        %v310 = vld [vmem:[%s274] sm:$0xff]
        %v311 = vld [vmem:[%s274 + $0x8] sm:$0xff]
        %v312 = vld [vmem:[%s274 + $0x10] sm:$0xff]
        %v313 = vld [vmem:[%s274 + $0x18] sm:$0xff]
        %v314 = vld [vmem:[%s274 + $0x20] sm:$0xff]
        %v315 = vld [vmem:[%s274 + $0x28] sm:$0xff]
        %v316 = vld [vmem:[%s274 + $0x30] sm:$0xff]
        %v317 = vpack.c.bf16 %v311, %v310
        %v318 = vpack.c.bf16 %v313, %v312
        %v319 = vpack.c.bf16 %v315, %v314
        %v320 = vpack.c.bf16 %v316, %v316
        %v321 = vld [vmem:[%s284] sm:$0xff]
        %v322 = vld [vmem:[%s284 + $0x8] sm:$0xff]
        %v323 = vld [vmem:[%s284 + $0x10] sm:$0xff]
        %v324 = vld [vmem:[%s284 + $0x18] sm:$0xff]
        %v325 = vpack.c.bf16 %v322, %v321
        %v326 = vpack.c.bf16 %v324, %v323
        %vm327 = vcmask 261120
        %v329 = vsel %vm327, %v317, 0
        %v332 = vsel %vm327, %v318, 0
        %v335 = vsel %vm327, %v319, 0
        %v338 = vsel %vm327, %v320, 0
        %340 = vmatpush.bf16.msra.mxu0 0
        %341 = vmatpush.bf16.msra.mxu0 0
        %342 = vmatpush.bf16.msra.mxu0 0
        %343 = vmatpush.bf16.msra.mxu0 0
        %344 = vmatpush.bf16.msra.mxu0 0
        %345 = vmatpush.bf16.msra.mxu0 0
        %346 = vmatpush.bf16.msra.mxu0 %v326
        %347 = vmatpush.bf16.msra.mxu0 %v325
        %348 = vmatmul.bf16.gmra.mxu0 %v329
        %v349 = vpop.f32.mrf.mxu0
        %v350 = vadd.f32 0.0, %v349
        %v351 = vpop.f32.mrf.mxu0
        %v352 = vadd.f32 0.0, %v351
        %353 = vmatmul.bf16.gmra.mxu0 %v332
        %v354 = vpop.f32.mrf.mxu0
        %v355 = vadd.f32 0.0, %v354
        %v356 = vpop.f32.mrf.mxu0
        %v357 = vadd.f32 0.0, %v356
        %358 = vmatmul.bf16.gmra.mxu0 %v335
        %v359 = vpop.f32.mrf.mxu0
        %v360 = vadd.f32 0.0, %v359
        %v361 = vpop.f32.mrf.mxu0
        %v362 = vadd.f32 0.0, %v361
        %363 = vmatmul.bf16.gmra.mxu0 %v338
        %v364 = vpop.f32.mrf.mxu0
        %v365 = vadd.f32 0.0, %v364
        %v366 = vpop.f32.mrf.mxu0
        %367 = vdwg.mxu0
        %v368 = vadd.f32 %v303, %v350
        %v369 = vadd.f32 %v304, %v352
        %v370 = vadd.f32 %v305, %v355
        %v371 = vadd.f32 %v306, %v357
        %v372 = vadd.f32 %v307, %v360
        %v373 = vadd.f32 %v308, %v362
        %v374 = vadd.f32 %v309, %v365
        %375 = vst [vmem:[#allocation2] sm:$0xff] %v368
        %376 = vst [vmem:[#allocation2 + $0x8] sm:$0xff] %v369
        %377 = vst [vmem:[#allocation2 + $0x10] sm:$0xff] %v370
        %378 = vst [vmem:[#allocation2 + $0x18] sm:$0xff] %v371
        %379 = vst [vmem:[#allocation2 + $0x20] sm:$0xff] %v372
        %380 = vst [vmem:[#allocation2 + $0x28] sm:$0xff] %v373
        %381 = vst [vmem:[#allocation2 + $0x30] sm:$0xff] %v374
        // Predicated region
        $region45: #{classification_head.1} parent=39 // pred_check
          %p382 = pneg %p292
        $region46: #{classification_head.1} parent=39 // pred_check_branch
          %384 = sbr.rel (%p382) target = $region48
        $region47: #{classification_head.1} parent=39 // pred_region
          %v385 = vld [vmem:[#allocation2] sm:$0xff]
          %v386 = vld [vmem:[#allocation2 + $0x8] sm:$0xff]
          %v387 = vld [vmem:[#allocation2 + $0x10] sm:$0xff]
          %v388 = vld [vmem:[#allocation2 + $0x18] sm:$0xff]
          %v389 = vld [vmem:[#allocation2 + $0x20] sm:$0xff]
          %v390 = vld [vmem:[#allocation2 + $0x28] sm:$0xff]
          %v391 = vld [vmem:[#allocation2 + $0x30] sm:$0xff]
          %v392 = vld [vmem:[%s2] sm:$0x1]
          %v394 = vperm.slane %v392, 0
          %v396 = vadd.f32 %v385, %v394
          %v397 = vadd.f32 %v386, %v394
          %v398 = vadd.f32 %v387, %v394
          %v399 = vadd.f32 %v388, %v394
          %v400 = vadd.f32 %v389, %v394
          %v401 = vadd.f32 %v390, %v394
          %v402 = vadd.f32 %v391, %v394
          %v403 = vmax.f32 %v396, 0.0
          %v404 = vmax.f32 %v397, 0.0
          %v405 = vmax.f32 %v398, 0.0
          %v406 = vmax.f32 %v399, 0.0
          %v407 = vmax.f32 %v400, 0.0
          %v408 = vmax.f32 %v401, 0.0
          %v409 = vmax.f32 %v402, 0.0
          %v410 = vpack.c.bf16 %v404, %v403
          %v411 = vpack.c.bf16 %v406, %v405
          %v412 = vpack.c.bf16 %v408, %v407
          %v413 = vpack.c.bf16 %v409, %v409
          %v414 = vld [vmem:[%s3] sm:$0xff]
          %v415 = vld [vmem:[%s3 + $0x8] sm:$0xff]
          %v416 = vld [vmem:[%s3 + $0x10] sm:$0xff]
          %v417 = vld [vmem:[%s3 + $0x18] sm:$0xff]
          %v418 = vld [vmem:[%s3 + $0x20] sm:$0xff]
          %v419 = vld [vmem:[%s3 + $0x28] sm:$0xff]
          %v420 = vld [vmem:[%s3 + $0x30] sm:$0xff]
          %v421 = vld [vmem:[%s3 + $0x38] sm:$0xff]
          %v422 = vld [vmem:[%s3 + $0x40] sm:$0xff]
          %v423 = vld [vmem:[%s3 + $0x48] sm:$0xff]
          %v424 = vld [vmem:[%s3 + $0x50] sm:$0xff]
          %v425 = vld [vmem:[%s3 + $0x58] sm:$0xff]
          %v426 = vld [vmem:[%s3 + $0x60] sm:$0xff]
          %v427 = vld [vmem:[%s3 + $0x68] sm:$0xff]
          %v428 = vld [vmem:[%s3 + $0x70] sm:$0xff]
          %v429 = vld [vmem:[%s3 + $0x78] sm:$0xff]
          %v430 = vpack.c.bf16 %v415, %v414
          %v431 = vpack.c.bf16 %v417, %v416
          %v432 = vpack.c.bf16 %v419, %v418
          %v433 = vpack.c.bf16 %v421, %v420
          %v434 = vpack.c.bf16 %v423, %v422
          %v435 = vpack.c.bf16 %v425, %v424
          %v436 = vpack.c.bf16 %v427, %v426
          %v437 = vpack.c.bf16 %v429, %v428
          %v438 = vld [vmem:[%s4] sm:$0x1]
          %v440 = vperm.slane %v438, 0
          %442 = vmatpush.bf16.msra.mxu0 %v437
          %443 = vmatpush.bf16.msra.mxu0 %v436
          %444 = vmatpush.bf16.msra.mxu0 %v435
          %445 = vmatpush.bf16.msra.mxu0 %v434
          %446 = vmatpush.bf16.msra.mxu0 %v433
          %447 = vmatpush.bf16.msra.mxu0 %v432
          %448 = vmatpush.bf16.msra.mxu0 %v431
          %449 = vmatpush.bf16.msra.mxu0 %v430
          %450 = vmatmul.bf16.gmra.mxu0 %v410
          %v451 = vpop.f32.mrf.mxu0
          %v452 = vadd.f32 %v440, %v451
          %v453 = vpop.f32.mrf.mxu0
          %v454 = vadd.f32 %v440, %v453
          %455 = vmatmul.bf16.gmra.mxu0 %v411
          %v456 = vpop.f32.mrf.mxu0
          %v457 = vadd.f32 %v440, %v456
          %v458 = vpop.f32.mrf.mxu0
          %v459 = vadd.f32 %v440, %v458
          %460 = vmatmul.bf16.gmra.mxu0 %v412
          %v461 = vpop.f32.mrf.mxu0
          %v462 = vadd.f32 %v440, %v461
          %v463 = vpop.f32.mrf.mxu0
          %v464 = vadd.f32 %v440, %v463
          %465 = vmatmul.bf16.gmra.mxu0 %v413
          %v466 = vpop.f32.mrf.mxu0
          %v467 = vadd.f32 %v440, %v466
          %v468 = vpop.f32.mrf.mxu0
          %469 = vdwg.mxu0
          %470 = vst [vmem:[%s262] sm:$0xff] %v452
          %471 = vst [vmem:[%s262 + $0x8] sm:$0xff] %v454
          %472 = vst [vmem:[%s262 + $0x10] sm:$0xff] %v457
          %473 = vst [vmem:[%s262 + $0x18] sm:$0xff] %v459
          %474 = vst [vmem:[%s262 + $0x20] sm:$0xff] %v462
          %475 = vst [vmem:[%s262 + $0x28] sm:$0xff] %v464
          %476 = vst [vmem:[%s262 + $0x30] sm:$0xff] %v467
        $region48: #{classification_head.1} parent=39 // pred_fallthru
          _
        %s477 = sand.u32 %s153, 1
        %s478 = sand.u32 %s153, 1
        %s479 = smul.addr %s478, 56
        %s480 = scalar_lea.vmem [#allocation3], %s479
        // Predicated region
        $region49: #{classification_head.1} parent=39 // pred_check
          %p481 = pneg %p163
        $region50: #{classification_head.1} parent=39 // pred_check_branch
          %483 = sbr.rel (%p481) target = $region52
        $region51: #{classification_head.1} parent=39 // pred_region
          %s484 = smul.u32 7, %s20
          %s485 = ssub.s32 13, %s484
          %p486 = scmp.lt.s32.totalorder %s485, 7
          %s487 = scalar_select %p486, %s485, 7
          %s488 = smul.u32 8, %s487
          %p489 = scmp.ne.s32.totalorder 0, %s488
          %s490 = smul.addr %s484, 8
          %s491 = scalar_lea.vmem %s5, %s490
          // Predicated region
          $region53: #{classification_head.1} parent=51 // pred_check
            %p492 = pneg %p489
          $region54: #{classification_head.1} parent=51 // pred_check_branch
            %494 = sbr.rel (%p492) target = $region56
          $region55: #{classification_head.1} parent=51 // pred_region
            // Predicated region
            $region57: #{classification_head.1} parent=55 // pred_check
              _
            $region58: #{classification_head.1} parent=55 // pred_check_branch
              %496 = sbr.rel (0) target = $region60
            $region59: #{classification_head.1} parent=55 // pred_region
              // Predicated region
              $region79: #{classification_head.1} parent=59 // pred_check
                _
              $region80: #{classification_head.1} parent=59 // pred_check_branch
                %559 = sbr.rel (0) target = $region82
              $region81: #{classification_head.1} parent=59 // pred_region
                %s560 = sdiv.u32.pop %s487, 7
                %s561 = srem.u32.pop %s487, 7
                // While loop
                $region83: #{classification_head.1} parent=81 // loop_pre_header
                  _
                $region84: #{classification_head.1} parent=81 // loop_header
                  %s563 = sphi 0, %s565
                  %p564 = scmp.ge.s32.totalorder %s563, %s560
                  %s568 = sphi 0, %s587
                  %s569 = sphi %s480, %s590
                  %s570 = sphi %s491, %s591
                $region85: #{classification_head.1} parent=81 // loop_header_branch
                  %567 = sbr.rel (%p564) target = $region89
                $region86: #{classification_head.1} parent=81 // loop_body
                  %v571 = vld [vmem:[%s569] sm:$0xff]
                  %572 = vst [vmem:[%s570] sm:$0xff] %v571
                  %v573 = vld [vmem:[%s569 + $0x8] sm:$0xff]
                  %574 = vst [vmem:[%s570 + $0x8] sm:$0xff] %v573
                  %v575 = vld [vmem:[%s569 + $0x10] sm:$0xff]
                  %576 = vst [vmem:[%s570 + $0x10] sm:$0xff] %v575
                  %v577 = vld [vmem:[%s569 + $0x18] sm:$0xff]
                  %578 = vst [vmem:[%s570 + $0x18] sm:$0xff] %v577
                  %v579 = vld [vmem:[%s569 + $0x20] sm:$0xff]
                  %580 = vst [vmem:[%s570 + $0x20] sm:$0xff] %v579
                  %v581 = vld [vmem:[%s569 + $0x28] sm:$0xff]
                  %582 = vst [vmem:[%s570 + $0x28] sm:$0xff] %v581
                  %v583 = vld [vmem:[%s569 + $0x30] sm:$0xff]
                  %584 = vst [vmem:[%s570 + $0x30] sm:$0xff] %v583
                  %s585 = sadd.s32 1, %s568
                  %p586 = scmp.ge.s32.totalorder %s585, %s560
                  %s587 = scalar_select %p586, 0, %s585
                  %s588 = smul.u32 %s587, 56
                  %s589 = smul.u32 %s587, 56
                  %s590 = scalar_lea.vmem %s480, %s588 [#allocation3]
                  %s591 = scalar_lea.vmem %s491, %s589
                $region87: #{classification_head.1} parent=81 // loop_footer
                  %s565 = sadd.s32 %s563, 1
                $region88: #{classification_head.1} parent=81 // loop_footer_branch
                  %562 = sbr.rel target = $region84
                $region89: #{classification_head.1} parent=81 // loop_exit
                  _
                %s592 = sdiv.u32.pop %s487, 7
                %s593 = srem.u32.pop %s487, 7
                %s594 = smul.u32 %s592, 7
                %s595 = smul.u32 8, %s594
                %s596 = scalar_lea.vmem %s480, %s595 [#allocation3]
                %s597 = smul.u32 8, %s594
                %s598 = scalar_lea.vmem %s491, %s597
                // While loop
                $region90: #{classification_head.1} parent=81 // loop_pre_header
                  _
                $region91: #{classification_head.1} parent=81 // loop_header
                  %s600 = sphi 0, %s602
                  %p601 = scmp.ge.s32.totalorder %s600, %s593
                  %s605 = sphi 0, %s612
                  %s606 = sphi %s596, %s615
                  %s607 = sphi %s598, %s616
                $region92: #{classification_head.1} parent=81 // loop_header_branch
                  %604 = sbr.rel (%p601) target = $region96
                $region93: #{classification_head.1} parent=81 // loop_body
                  %v608 = vld [vmem:[%s606] sm:$0xff]
                  %609 = vst [vmem:[%s607] sm:$0xff] %v608
                  %s610 = sadd.s32 1, %s605
                  %p611 = scmp.ge.s32.totalorder %s610, %s593
                  %s612 = scalar_select %p611, 0, %s610
                  %s613 = smul.u32 %s612, 8
                  %s614 = smul.u32 %s612, 8
                  %s615 = scalar_lea.vmem %s596, %s613 [#allocation3]
                  %s616 = scalar_lea.vmem %s598, %s614
                $region94: #{classification_head.1} parent=81 // loop_footer
                  %s602 = sadd.s32 %s600, 1
                $region95: #{classification_head.1} parent=81 // loop_footer_branch
                  %599 = sbr.rel target = $region91
                $region96: #{classification_head.1} parent=81 // loop_exit
                  _
              $region82: #{classification_head.1} parent=59 // pred_fallthru
                _
              // Predicated region
              $region97: #{classification_head.1} parent=59 // pred_check
                _
              $region98: #{classification_head.1} parent=59 // pred_check_branch
                %618 = sbr.rel target = $region100
              $region99: #{classification_head.1} parent=59 // pred_region
                _
              $region100: #{classification_head.1} parent=59 // pred_fallthru
                _
            $region60: #{classification_head.1} parent=55 // pred_fallthru
              _
            // Predicated region
            $region61: #{classification_head.1} parent=55 // pred_check
              _
            $region62: #{classification_head.1} parent=55 // pred_check_branch
              %498 = sbr.rel target = $region64
            $region63: #{classification_head.1} parent=55 // pred_region
              %s500 = ssub.s32 256, 1
              %s501 = sdiv.u32.pop %s487, 7
              %s502 = srem.u32.pop %s487, 7
              // While loop
              $region65: #{classification_head.1} parent=63 // loop_pre_header
                _
              $region66: #{classification_head.1} parent=63 // loop_header
                %s504 = sphi 0, %s506
                %p505 = scmp.ge.s32.totalorder %s504, %s501
                %s509 = sphi 0, %s528
                %s510 = sphi %s480, %s531
                %s511 = sphi %s491, %s532
              $region67: #{classification_head.1} parent=63 // loop_header_branch
                %508 = sbr.rel (%p505) target = $region71
              $region68: #{classification_head.1} parent=63 // loop_body
                %v512 = vld [vmem:[%s510] sm:%s500]
                %513 = vst [vmem:[%s511] sm:%s500] %v512
                %v514 = vld [vmem:[%s510 + $0x8] sm:%s500]
                %515 = vst [vmem:[%s511 + $0x8] sm:%s500] %v514
                %v516 = vld [vmem:[%s510 + $0x10] sm:%s500]
                %517 = vst [vmem:[%s511 + $0x10] sm:%s500] %v516
                %v518 = vld [vmem:[%s510 + $0x18] sm:%s500]
                %519 = vst [vmem:[%s511 + $0x18] sm:%s500] %v518
                %v520 = vld [vmem:[%s510 + $0x20] sm:%s500]
                %521 = vst [vmem:[%s511 + $0x20] sm:%s500] %v520
                %v522 = vld [vmem:[%s510 + $0x28] sm:%s500]
                %523 = vst [vmem:[%s511 + $0x28] sm:%s500] %v522
                %v524 = vld [vmem:[%s510 + $0x30] sm:%s500]
                %525 = vst [vmem:[%s511 + $0x30] sm:%s500] %v524
                %s526 = sadd.s32 1, %s509
                %p527 = scmp.ge.s32.totalorder %s526, %s501
                %s528 = scalar_select %p527, 0, %s526
                %s529 = smul.u32 %s528, 56
                %s530 = smul.u32 %s528, 56
                %s531 = scalar_lea.vmem %s480, %s529 [#allocation3]
                %s532 = scalar_lea.vmem %s491, %s530
              $region69: #{classification_head.1} parent=63 // loop_footer
                %s506 = sadd.s32 %s504, 1
              $region70: #{classification_head.1} parent=63 // loop_footer_branch
                %503 = sbr.rel target = $region66
              $region71: #{classification_head.1} parent=63 // loop_exit
                _
              %s533 = sdiv.u32.pop %s487, 7
              %s534 = srem.u32.pop %s487, 7
              %s535 = smul.u32 %s533, 7
              %s536 = smul.u32 8, %s535
              %s537 = scalar_lea.vmem %s480, %s536 [#allocation3]
              %s538 = smul.u32 8, %s535
              %s539 = scalar_lea.vmem %s491, %s538
              // While loop
              $region72: #{classification_head.1} parent=63 // loop_pre_header
                _
              $region73: #{classification_head.1} parent=63 // loop_header
                %s541 = sphi 0, %s543
                %p542 = scmp.ge.s32.totalorder %s541, %s534
                %s546 = sphi 0, %s553
                %s547 = sphi %s537, %s556
                %s548 = sphi %s539, %s557
              $region74: #{classification_head.1} parent=63 // loop_header_branch
                %545 = sbr.rel (%p542) target = $region78
              $region75: #{classification_head.1} parent=63 // loop_body
                %v549 = vld [vmem:[%s547] sm:%s500]
                %550 = vst [vmem:[%s548] sm:%s500] %v549
                %s551 = sadd.s32 1, %s546
                %p552 = scmp.ge.s32.totalorder %s551, %s534
                %s553 = scalar_select %p552, 0, %s551
                %s554 = smul.u32 %s553, 8
                %s555 = smul.u32 %s553, 8
                %s556 = scalar_lea.vmem %s537, %s554 [#allocation3]
                %s557 = scalar_lea.vmem %s539, %s555
              $region76: #{classification_head.1} parent=63 // loop_footer
                %s543 = sadd.s32 %s541, 1
              $region77: #{classification_head.1} parent=63 // loop_footer_branch
                %540 = sbr.rel target = $region73
              $region78: #{classification_head.1} parent=63 // loop_exit
                _
            $region64: #{classification_head.1} parent=55 // pred_fallthru
              _
          $region56: #{classification_head.1} parent=51 // pred_fallthru
            _
          %619 = vnop
        $region52: #{classification_head.1} parent=39 // pred_fallthru
          _
      $region40: #{classification_head.1} parent=5 // pred_fallthru
        _
      %p620 = scmp.le.s32.totalorder 2, %s11
      // Predicated region
      $region101: #{classification_head.1} parent=5 // pred_check
        %p621 = pneg %p620
      $region102: #{classification_head.1} parent=5 // pred_check_branch
        %623 = sbr.rel (%p621) target = $region104
      $region103: #{classification_head.1} parent=5 // pred_region
        %s624 = ssub.s32 %s11, 2
        // Predicated region
        $region105: #{classification_head.1} parent=103 // pred_check
          %p625 = pneg %p169
        $region106: #{classification_head.1} parent=103 // pred_check_branch
          %627 = sbr.rel (%p625) target = $region108
        $region107: #{classification_head.1} parent=103 // pred_region
          %s628 = sand.u32 %s154, 1
          %s629 = sand.u32 %s154, 1
          %s630 = smul.addr %s629, 56
          %s631 = scalar_lea.vmem [#allocation3], %s630
        $region108: #{classification_head.1} parent=103 // pred_fallthru
          _
      $region104: #{classification_head.1} parent=5 // pred_fallthru
        _
    $region6: #{classification_head.1} parent=1 // loop_footer
      %s15 = sadd.s32 1, %s11
    $region7: #{classification_head.1} parent=1 // loop_footer_branch
      %10 = sbr.rel target = $region3
    $region8: #{classification_head.1} parent=1 // loop_exit
      _

</llo_original>
